<compile_context>
chip_gen: v7x
topology: tpu7x:2x2x1
jax: 0.10.0
libtpu: 0.0.40
codegen_flags: <defaults>
</compile_context>

<pallas_src>
import functools
import math

import jax
import jax.numpy as jnp
from jax import lax
from jax.experimental import pallas as pl
from jax.experimental.pallas import tpu as pltpu

EPS = 1e-5  # torch.nn.LayerNorm default


def _round_up(x, m):
    return (x + m - 1) // m * m


def _vmem_capacity_bytes():
    """Physical VMEM per TensorCore; conservative 64 MiB (v7x) if unknown."""
    try:
        info = pltpu.get_tpu_info()
        cap = getattr(info, "vmem_capacity_bytes", None)
        if cap:
            return int(cap)
    except Exception:  # capability probe only; safe fallback below
        pass
    return 64 * 1024 * 1024


# ---------------------------------------------------------------------------
# Kernels
# ---------------------------------------------------------------------------

def prenorm_kernel(x_ref, gamma_ref, beta_ref, w_ref, wb_ref, o_ref, *,
                   one_pass_stats=True):
    """Fused LayerNorm + Linear for one row block; weight fully resident."""
    x = x_ref[...].astype(jnp.float32)          # (tm, D)
    inv_d = 1.0 / x.shape[-1]

    if one_pass_stats:
        # Single read of the tile: sum and sum-of-squares together.
        mean = jnp.sum(x, axis=-1, keepdims=True) * inv_d
        ex2 = jnp.sum(x * x, axis=-1, keepdims=True) * inv_d
        var = jnp.maximum(ex2 - mean * mean, 0.0)
        centered = x - mean
    else:
        mean = jnp.sum(x, axis=-1, keepdims=True) * inv_d
        centered = x - mean
        var = jnp.sum(centered * centered, axis=-1, keepdims=True) * inv_d

    y = centered * lax.rsqrt(var + EPS) * gamma_ref[...] + beta_ref[...]

    out = jnp.dot(y.astype(w_ref.dtype), w_ref[...],
                  preferred_element_type=jnp.float32) + wb_ref[...]
    o_ref[...] = out.astype(o_ref.dtype)


def prenorm_ksplit_kernel(xfull_ref, xk_ref, gamma_ref, beta_ref, w_ref,
                          wb_ref, o_ref, mean_ref, rstd_ref, acc_ref, *,
                          one_pass_stats=True):
    """K-split variant: weight streamed in (tk, D) blocks, f32 accumulator."""
    k = pl.program_id(1)

    @pl.when(k == 0)
    def _init():
        xf = xfull_ref[...].astype(jnp.float32)  # full row block, fetched once
        inv_d = 1.0 / xf.shape[-1]
        if one_pass_stats:
            mean = jnp.sum(xf, axis=-1, keepdims=True) * inv_d
            ex2 = jnp.sum(xf * xf, axis=-1, keepdims=True) * inv_d
            var = jnp.maximum(ex2 - mean * mean, 0.0)
        else:
            mean = jnp.sum(xf, axis=-1, keepdims=True) * inv_d
            c = xf - mean
            var = jnp.sum(c * c, axis=-1, keepdims=True) * inv_d
        mean_ref[...] = mean
        rstd_ref[...] = lax.rsqrt(var + EPS)
        acc_ref[...] = jnp.zeros_like(acc_ref)

    xs = xk_ref[...].astype(jnp.float32)         # (tm, tk) slice of the rows
    y = (xs - mean_ref[...]) * rstd_ref[...] * gamma_ref[...] + beta_ref[...]
    acc_ref[...] += jnp.dot(y.astype(w_ref.dtype), w_ref[...],
                            preferred_element_type=jnp.float32)

    @pl.when(k == pl.num_programs(1) - 1)
    def _finalize():
        o_ref[...] = (acc_ref[...] + wb_ref[...]).astype(o_ref.dtype)


# ---------------------------------------------------------------------------
# pallas_call wrappers
# ---------------------------------------------------------------------------

@functools.partial(
    jax.jit,
    static_argnames=("tm", "single_buffer_consts", "one_pass_stats",
                     "vmem_limit"))
def _prenorm_single(x2, gamma, beta, w, wb, *, tm, single_buffer_consts,
                    one_pass_stats, vmem_limit):
    M, D = x2.shape
    grid = (pl.cdiv(M, tm),)

    # Grid-invariant operands are never re-fetched; one VMEM buffer each.
    const_kwargs = (dict(pipeline_mode=pl.Buffered(1))
                    if single_buffer_consts else {})

    cost = pl.CostEstimate(
        flops=int(2 * M * D * D + 8 * M * D),
        transcendentals=int(M),
        bytes_accessed=int(2 * M * D * x2.dtype.itemsize
                           + D * D * w.dtype.itemsize + 3 * D * 4))

    return pl.pallas_call(
        functools.partial(prenorm_kernel, one_pass_stats=one_pass_stats),
        out_shape=jax.ShapeDtypeStruct((M, D), x2.dtype),
        grid_spec=pltpu.PrefetchScalarGridSpec(
            num_scalar_prefetch=0,
            grid=grid,
            in_specs=[
                pl.BlockSpec((tm, D), lambda i: (i, 0)),                # x rows
                pl.BlockSpec((1, D), lambda i: (0, 0), **const_kwargs),  # gamma
                pl.BlockSpec((1, D), lambda i: (0, 0), **const_kwargs),  # beta
                pl.BlockSpec((D, D), lambda i: (0, 0), **const_kwargs),  # W
                pl.BlockSpec((1, D), lambda i: (0, 0), **const_kwargs),  # bias
            ],
            out_specs=pl.BlockSpec((tm, D), lambda i: (i, 0)),
        ),
        compiler_params=pltpu.CompilerParams(
            dimension_semantics=("parallel",),
            vmem_limit_bytes=int(vmem_limit)),
        cost_estimate=cost,
    )(x2, gamma, beta, w, wb)


@functools.partial(
    jax.jit,
    static_argnames=("tm", "tk", "single_buffer_consts", "one_pass_stats",
                     "vmem_limit"))
def _prenorm_ksplit(x2, gamma, beta, w, wb, *, tm, tk, single_buffer_consts,
                    one_pass_stats, vmem_limit):
    M, D = x2.shape
    assert D % tk == 0
    grid = (pl.cdiv(M, tm), D // tk)

    const_kwargs = (dict(pipeline_mode=pl.Buffered(1))
                    if single_buffer_consts else {})

    cost = pl.CostEstimate(
        flops=int(2 * M * D * D + 8 * M * D),
        transcendentals=int(M),
        bytes_accessed=int(3 * M * D * x2.dtype.itemsize
                           + pl.cdiv(M, tm) * D * D * w.dtype.itemsize
                           + 3 * D * 4))

    return pl.pallas_call(
        functools.partial(prenorm_ksplit_kernel, one_pass_stats=one_pass_stats),
        out_shape=jax.ShapeDtypeStruct((M, D), x2.dtype),
        grid_spec=pltpu.PrefetchScalarGridSpec(
            num_scalar_prefetch=0,
            grid=grid,
            in_specs=[
                pl.BlockSpec((tm, D), lambda i, k: (i, 0)),    # full rows (LN)
                pl.BlockSpec((tm, tk), lambda i, k: (i, k)),   # K-slice (MXU)
                pl.BlockSpec((1, tk), lambda i, k: (0, k)),    # gamma slice
                pl.BlockSpec((1, tk), lambda i, k: (0, k)),    # beta slice
                pl.BlockSpec((tk, D), lambda i, k: (k, 0)),    # W K-block
                pl.BlockSpec((1, D), lambda i, k: (0, 0), **const_kwargs),  # b
            ],
            out_specs=pl.BlockSpec((tm, D), lambda i, k: (i, 0)),
            scratch_shapes=[
                pltpu.VMEM((tm, 1), jnp.float32),   # mean
                pltpu.VMEM((tm, 1), jnp.float32),   # rstd
                pltpu.VMEM((tm, D), jnp.float32),   # f32 accumulator
            ],
        ),
        compiler_params=pltpu.CompilerParams(
            dimension_semantics=("parallel", "arbitrary"),
            vmem_limit_bytes=int(vmem_limit)),
        cost_estimate=cost,
    )(x2, x2, gamma, beta, w, wb)


# ---------------------------------------------------------------------------
# Tiling / VMEM policy
# ---------------------------------------------------------------------------

_TM_CANDIDATES = (1024, 512, 256, 128, 64, 32, 16, 8)


def _choose_tiles(M, D, x_itemsize, w_itemsize, vmem_cap, tm, tk,
                  force_k_split):
    out_itemsize = x_itemsize
    budget_cap = int(0.7 * vmem_cap)   # headroom for Mosaic internal scratch

    sub = 8 if x_itemsize >= 4 else 16          # sublane multiple of row tile
    max_tm = 512 if x_itemsize >= 4 else 1024   # MXU-friendly upper bound
    if tm is not None:
        tm_cands = [tm]
    elif M <= sub:
        tm_cands = [M]                          # one block equal to full rows
    else:
        row_cap = max(_round_up(min(M, max_tm), sub), sub)
        tm_cands = [c for c in _TM_CANDIDATES if sub <= c <= row_cap]
        if not tm_cands or tm_cands[0] != row_cap:
            tm_cands = [row_cap] + tm_cands

    can_ksplit = (D % 128 == 0) and (D // 128 >= 2)

    def single_budget(t):
        return (2 * t * D * (x_itemsize + out_itemsize)   # x/out double-buffer
                + 2 * D * D * w_itemsize                  # resident weight
                + 6 * max(D, 128) * 4                     # gamma/beta/bias
                + 4 * t * max(D, 128) * 4)                # f32 temporaries

    def ksplit_budget(t, k):
        return (2 * t * D * (x_itemsize + out_itemsize)   # full rows + out
                + 2 * t * k * x_itemsize                  # K-slices of x
                + 2 * k * D * w_itemsize                  # streamed weight
                + (4 * k + 2 * D) * 4                     # gamma/beta/bias
                + t * D * 4 + 2 * t * 128 * 4             # acc + mean/rstd
                + (3 * t * max(k, 128) + t * D) * 4)      # f32 temporaries

    use_ksplit = force_k_split and can_ksplit
    if not use_ksplit:
        for cand in tm_cands:
            b = single_budget(cand)
            if b <= budget_cap:
                return False, cand, None, b
        if not can_ksplit:
            # TODO(synk): ragged-D weights larger than VMEM would need an
            # N-split over the output columns; fall through with the smallest
            # row tile and let the compiler report if it truly does not fit.
            cand = tm_cands[-1]
            return False, cand, None, single_budget(cand)
        use_ksplit = True

    if tk is None:
        tk = 128
        for c in (1024, 512, 256):
            if D % c == 0 and 2 * c * D * w_itemsize <= budget_cap // 3:
                tk = c
                break
    for cand in tm_cands:
        b = ksplit_budget(cand, tk)
        if b <= budget_cap:
            return True, cand, tk, b
    cand = tm_cands[-1]
    return True, cand, tk, ksplit_budget(cand, tk)


# ---------------------------------------------------------------------------
# Public wrapper
# ---------------------------------------------------------------------------

def prenorm(x, gamma, beta, w, wb, *, tm=None, tk=None,
            cast_weight_to_bf16=False, force_k_split=False,
            one_pass_stats=True):
    """y = Linear(LayerNorm(x)).  x: (..., D); gamma/beta/wb: (1, D); w: (D, D)."""
    *lead, D = x.shape
    M = math.prod(lead) if lead else 1

    x2 = x.reshape(M, D)                         # contiguity-preserving view
    gamma2 = gamma.reshape(1, D).astype(jnp.float32)
    beta2 = beta.reshape(1, D).astype(jnp.float32)
    wb2 = wb.reshape(1, D).astype(jnp.float32)
    w2 = w
    if cast_weight_to_bf16 and w.dtype == jnp.float32:
        # Opt-in: halves weight DMA/VMEM and runs the MXU at full bf16 rate;
        # accumulation stays f32 via preferred_element_type.
        w2 = w.astype(jnp.bfloat16)

    vmem_cap = _vmem_capacity_bytes()
    use_ksplit, tm_, tk_, budget = _choose_tiles(
        M, D, x2.dtype.itemsize, w2.dtype.itemsize, vmem_cap, tm, tk,
        force_k_split)
    vmem_limit = int(min(max(budget * 3 // 2 + (2 << 20), 16 << 20),
                         int(0.85 * vmem_cap)))

    common = dict(tm=tm_, one_pass_stats=one_pass_stats,
                  vmem_limit=vmem_limit)
    if use_ksplit:
        call = functools.partial(_prenorm_ksplit, tk=tk_, **common)
    else:
        call = functools.partial(_prenorm_single, **common)

    try:
        out2 = call(x2, gamma2, beta2, w2, wb2, single_buffer_consts=True)
    except (TypeError, ValueError, NotImplementedError,
            pltpu.LoweringException):
        # Narrow capability fallback: pipeline_mode=pl.Buffered(1) unsupported
        # on this jax build.  Genuine compile/runtime failures (e.g. VMEM OOM,
        # which surfaces as a RuntimeError/XlaRuntimeError) are NOT swallowed.
        out2 = call(x2, gamma2, beta2, w2, wb2, single_buffer_consts=False)

    return out2.reshape(*lead, D)


def reference(x, gamma, beta, w, wb):
    xf = x.astype(jnp.float32)
    mean = jnp.mean(xf, axis=-1, keepdims=True)
    var = jnp.mean((xf - mean) ** 2, axis=-1, keepdims=True)
    y = (xf - mean) / jnp.sqrt(var + EPS) * gamma.reshape(-1) + beta.reshape(-1)
    out = jnp.matmul(y, w.astype(jnp.float32),
                     precision=lax.Precision.HIGHEST) + wb.reshape(-1)
    return out.astype(x.dtype)


if __name__ == "__main__":
    key = jax.random.PRNGKey(0)
    k1, k2, k3, k4, k5, k6, k7 = jax.random.split(key, 7)

    # Tolerance note: the in-kernel f32 matmul uses the MXU's default
    # (bf16-pass) precision, while the reference uses HIGHEST; 3e-2 covers the
    # worst-case single-pass rounding at these contraction sizes.
    ATOL = RTOL = 3e-2

    # ---- Case 1: PreNorm(dim=32) wrapping Linear(32, 32), small shapes ----
    B, N, D = 2, 8, 32
    x = jax.random.normal(k1, (B, N, D), dtype=jnp.float32)
    gamma = jnp.ones((1, D), jnp.float32)        # torch LayerNorm default init
    beta = jnp.zeros((1, D), jnp.float32)
    w = jax.random.normal(k2, (D, D), jnp.float32) / jnp.sqrt(D)
    wb = jax.random.normal(k3, (1, D), jnp.float32) * 0.01

    out = prenorm(x, gamma, beta, w, wb)
    jax.block_until_ready(out)
    ref = reference(x, gamma, beta, w, wb)
    assert out.shape == (B, N, D)
    assert jnp.allclose(out, ref, atol=ATOL, rtol=RTOL), (
        float(jnp.max(jnp.abs(out - ref))))

    # ---- Case 2: exercise the K-split (streamed-weight accumulator) path ----
    B2, N2, D2 = 2, 16, 256
    x2 = jax.random.normal(k4, (B2, N2, D2), dtype=jnp.float32)
    gamma2 = 1.0 + 0.1 * jax.random.normal(k5, (1, D2), jnp.float32)
    beta2 = 0.1 * jax.random.normal(k6, (1, D2), jnp.float32)
    w2 = jax.random.normal(k7, (D2, D2), jnp.float32) / jnp.sqrt(D2)
    wb2 = jnp.zeros((1, D2), jnp.float32)

    out2 = prenorm(x2, gamma2, beta2, w2, wb2, force_k_split=True, tk=128)
    jax.block_until_ready(out2)
    ref2 = reference(x2, gamma2, beta2, w2, wb2)
    assert out2.shape == (B2, N2, D2)
    assert jnp.allclose(out2, ref2, atol=ATOL, rtol=RTOL), (
        float(jnp.max(jnp.abs(out2 - ref2))))

    print("KERNEL_OK")
</pallas_src>

<mosaic_0001>
module attributes {stable_mosaic.version = 11 : i64} {
  func.func @prenorm_kernel(%arg0: i32, %arg1: memref<16x32xf32, #tpu.memory_space<vmem>>, %arg2: memref<1x32xf32, #tpu.memory_space<vmem>>, %arg3: memref<1x32xf32, #tpu.memory_space<vmem>>, %arg4: memref<32x32xf32, #tpu.memory_space<vmem>>, %arg5: memref<1x32xf32, #tpu.memory_space<vmem>>, %arg6: memref<16x32xf32, #tpu.memory_space<vmem>>) attributes {dimension_semantics = [#tpu.dimension_semantics<parallel>], iteration_bounds = array<i64: 1>, scalar_prefetch = 0 : i64, scratch_operands = 0 : i64, tpu.core_type = #tpu.core_type<tc>, window_params = [{transform_indices = @transform_0, window_bounds = array<i64: 16, 32>}, {pipeline_mode = #tpu.pipeline_mode<synchronous>, transform_indices = @transform_1, window_bounds = array<i64: 1, 32>}, {pipeline_mode = #tpu.pipeline_mode<synchronous>, transform_indices = @transform_2, window_bounds = array<i64: 1, 32>}, {pipeline_mode = #tpu.pipeline_mode<synchronous>, transform_indices = @transform_3, window_bounds = array<i64: 32, 32>}, {pipeline_mode = #tpu.pipeline_mode<synchronous>, transform_indices = @transform_4, window_bounds = array<i64: 1, 32>}, {transform_indices = @transform_5, window_bounds = array<i64: 16, 32>}]} {
    %c0 = arith.constant 0 : index
    %c0_0 = arith.constant 0 : index
    %0 = vector.load %arg1[%c0, %c0_0] : memref<16x32xf32, #tpu.memory_space<vmem>>, vector<16x32xf32>
    %cst = arith.constant dense<0.000000e+00> : vector<16xf32>
    %1 = vector.multi_reduction <add>, %0, %cst [1] : vector<16x32xf32> to vector<16xf32>
    %2 = vector.shape_cast %1 : vector<16xf32> to vector<16x1xf32>
    %cst_1 = arith.constant 3.125000e-02 : f32
    %3 = vector.broadcast %cst_1 : f32 to vector<16x1xf32>
    %4 = arith.mulf %2, %3 : vector<16x1xf32>
    %5 = arith.mulf %0, %0 : vector<16x32xf32>
    %cst_2 = arith.constant dense<0.000000e+00> : vector<16xf32>
    %6 = vector.multi_reduction <add>, %5, %cst_2 [1] : vector<16x32xf32> to vector<16xf32>
    %7 = vector.shape_cast %6 : vector<16xf32> to vector<16x1xf32>
    %cst_3 = arith.constant 3.125000e-02 : f32
    %8 = vector.broadcast %cst_3 : f32 to vector<16x1xf32>
    %9 = arith.mulf %7, %8 : vector<16x1xf32>
    %10 = arith.mulf %4, %4 : vector<16x1xf32>
    %11 = arith.subf %9, %10 : vector<16x1xf32>
    %cst_4 = arith.constant 0.000000e+00 : f32
    %12 = vector.broadcast %cst_4 : f32 to vector<16x1xf32>
    %13 = arith.maximumf %11, %12 : vector<16x1xf32>
    %14 = vector.broadcast %4 : vector<16x1xf32> to vector<16x32xf32>
    %15 = arith.subf %0, %14 : vector<16x32xf32>
    %cst_5 = arith.constant 9.99999974E-6 : f32
    %16 = vector.broadcast %cst_5 : f32 to vector<16x1xf32>
    %17 = arith.addf %13, %16 : vector<16x1xf32>
    %18 = math.rsqrt %17 : vector<16x1xf32>
    %19 = vector.broadcast %18 : vector<16x1xf32> to vector<16x32xf32>
    %20 = arith.mulf %15, %19 : vector<16x32xf32>
    %c0_6 = arith.constant 0 : index
    %c0_7 = arith.constant 0 : index
    %21 = vector.load %arg2[%c0_6, %c0_7] : memref<1x32xf32, #tpu.memory_space<vmem>>, vector<1x32xf32>
    %22 = vector.broadcast %21 : vector<1x32xf32> to vector<16x32xf32>
    %23 = arith.mulf %20, %22 : vector<16x32xf32>
    %c0_8 = arith.constant 0 : index
    %c0_9 = arith.constant 0 : index
    %24 = vector.load %arg3[%c0_8, %c0_9] : memref<1x32xf32, #tpu.memory_space<vmem>>, vector<1x32xf32>
    %25 = vector.broadcast %24 : vector<1x32xf32> to vector<16x32xf32>
    %26 = arith.addf %23, %25 : vector<16x32xf32>
    %c0_10 = arith.constant 0 : index
    %c0_11 = arith.constant 0 : index
    %27 = vector.load %arg4[%c0_10, %c0_11] : memref<32x32xf32, #tpu.memory_space<vmem>>, vector<32x32xf32>
    %cst_12 = arith.constant dense<0.000000e+00> : vector<16x32xf32>
    %28 = tpu.matmul %26, %27, %cst_12 {dimension_numbers = #tpu.dot_dimension_numbers<[1], [0], [0], [1], [0, 0, 1, 1], [], []>} : vector<16x32xf32>, vector<32x32xf32>, vector<16x32xf32> -> vector<16x32xf32>
    %c0_13 = arith.constant 0 : index
    %c0_14 = arith.constant 0 : index
    %29 = vector.load %arg5[%c0_13, %c0_14] : memref<1x32xf32, #tpu.memory_space<vmem>>, vector<1x32xf32>
    %30 = vector.broadcast %29 : vector<1x32xf32> to vector<16x32xf32>
    %31 = arith.addf %28, %30 : vector<16x32xf32>
    %c0_15 = arith.constant 0 : index
    %c0_16 = arith.constant 0 : index
    %32 = vector.load %arg6[%c0_15, %c0_16] : memref<16x32xf32, #tpu.memory_space<vmem>>, vector<16x32xf32>
    tpu.vector_store %arg6[%c0_15, %c0_16], %31 {strides = array<i32>} : memref<16x32xf32, #tpu.memory_space<vmem>>, vector<16x32xf32>,
    return
  }
  func.func @transform_0(%arg0: i32) -> (i32, i32) {
    %c0_i32 = arith.constant 0 : i32
    %c0_i32_0 = arith.constant 0 : i32
    return %arg0, %c0_i32 : i32, i32
  }
  func.func @transform_1(%arg0: i32) -> (i32, i32) {
    %c0_i32 = arith.constant 0 : i32
    %c0_i32_0 = arith.constant 0 : i32
    %c0_i32_1 = arith.constant 0 : i32
    return %c0_i32, %c0_i32_0 : i32, i32
  }
  func.func @transform_2(%arg0: i32) -> (i32, i32) {
    %c0_i32 = arith.constant 0 : i32
    %c0_i32_0 = arith.constant 0 : i32
    %c0_i32_1 = arith.constant 0 : i32
    return %c0_i32, %c0_i32_0 : i32, i32
  }
  func.func @transform_3(%arg0: i32) -> (i32, i32) {
    %c0_i32 = arith.constant 0 : i32
    %c0_i32_0 = arith.constant 0 : i32
    %c0_i32_1 = arith.constant 0 : i32
    return %c0_i32, %c0_i32_0 : i32, i32
  }
  func.func @transform_4(%arg0: i32) -> (i32, i32) {
    %c0_i32 = arith.constant 0 : i32
    %c0_i32_0 = arith.constant 0 : i32
    %c0_i32_1 = arith.constant 0 : i32
    return %c0_i32, %c0_i32_0 : i32, i32
  }
  func.func @transform_5(%arg0: i32) -> (i32, i32) {
    %c0_i32 = arith.constant 0 : i32
    %c0_i32_0 = arith.constant 0 : i32
    return %arg0, %c0_i32 : i32, i32
  }
}

</mosaic_0001>

<llo_original>
// kernel: _prenorm_single.1
$region0: #{_prenorm_single.1}
  #allocation0 [shape = 'u32[]', space=smem, size = 0x4, offset = 0x4, fixed_abs, tag = 'smem constant byte address 0x4 - core index']
  #allocation1 [shape = 'u32[144,128]{1,0:T(1,128)}', space=vmem, size = 0x12000, scoped, tag = 'internal scratch']
  %s0 = inlined_call_operand.hbm [shape: f32[16,32], index: 0, kind: input, shape index: {}]
  %s1 = inlined_call_operand.vmem [shape: f32[1,32], index: 1, kind: input, shape index: {}]
  %s2 = inlined_call_operand.vmem [shape: f32[1,32], index: 2, kind: input, shape index: {}]
  %s3 = inlined_call_operand.hbm [shape: f32[32,32], index: 3, kind: input, shape index: {}]
  %s4 = inlined_call_operand.vmem [shape: f32[1,32], index: 4, kind: input, shape index: {}]
  %s5 = inlined_call_operand.hbm [shape: f32[16,32], index: 5, kind: output, shape index: {}]
  %s6 = sld [smem:[#allocation0]]
  $region38: #{_prenorm_single.1} parent=0
    _
  %s8 = ssub.s32 1, %s6
  %s9 = scalar_select 0, %s8, %s6
  $region1: #{_prenorm_single.1} parent=0
    #allocation2 [shape = 'u8[8192]{0}', space=vmem, size = 0x2000, scoped, tag = 'input window, operand 0, single buffered']
    #allocation3 [shape = 's32[1]{0}', space=sflag, size = 0x4, scoped, tag = 'scoped memory for _prenorm_single.1']
    #allocation4 [shape = 's32[1]{0}', space=sflag, size = 0x4, scoped, tag = 'scoped memory for _prenorm_single.1']
    #allocation5 [shape = 'u8[16384]{0}', space=vmem, size = 0x4000, scoped, tag = 'input window, operand 3, single buffered']
    #allocation6 [shape = 's32[1]{0}', space=sflag, size = 0x4, scoped, tag = 'scoped memory for _prenorm_single.1']
    #allocation7 [shape = 'u8[8192]{0}', space=vmem, size = 0x2000, scoped, tag = 'output window, operand 0, single buffered']
    %10 = vsyncpa [#allocation3], 0
    %11 = vsyncpa [#allocation6], 0
    %12 = vsyncpa [#allocation4], 0
    // Predicated region
    $region2: #{_prenorm_single.1} parent=1 // pred_check
      _
    $region3: #{_prenorm_single.1} parent=1 // pred_check_branch
      %14 = sbr.rel (0) target = $region5
    $region4: #{_prenorm_single.1} parent=1 // pred_region
      %s16 = ssub.s32 256, 256
      %17 = vsyncadd [#allocation3], %s16
      %s18 = sshll.u32 [#allocation2], 4
      %s19 = int_to_ptr.vmem [resolvable:$true] %s18
      %24 = dma.hbm_to_vmem [thread:$0]  %s0, 256, %s19, [#allocation3], 128, 128, 8
    $region5: #{_prenorm_single.1} parent=1 // pred_fallthru
      _
    // Predicated region
    $region6: #{_prenorm_single.1} parent=1 // pred_check
      _
    $region7: #{_prenorm_single.1} parent=1 // pred_check_branch
      %26 = sbr.rel (0) target = $region9
    $region8: #{_prenorm_single.1} parent=1 // pred_region
      _
    $region9: #{_prenorm_single.1} parent=1 // pred_fallthru
      _
    // Predicated region
    $region10: #{_prenorm_single.1} parent=1 // pred_check
      _
    $region11: #{_prenorm_single.1} parent=1 // pred_check_branch
      %28 = sbr.rel (0) target = $region13
    $region12: #{_prenorm_single.1} parent=1 // pred_region
      _
    $region13: #{_prenorm_single.1} parent=1 // pred_fallthru
      _
    // Predicated region
    $region14: #{_prenorm_single.1} parent=1 // pred_check
      _
    $region15: #{_prenorm_single.1} parent=1 // pred_check_branch
      %30 = sbr.rel (0) target = $region17
    $region16: #{_prenorm_single.1} parent=1 // pred_region
      %s32 = ssub.s32 512, 512
      %33 = vsyncadd [#allocation6], %s32
      %s34 = sshll.u32 [#allocation5], 4
      %s35 = int_to_ptr.vmem [resolvable:$true] %s34
      %40 = dma.hbm_to_vmem [thread:$0]  %s3, 512, %s35, [#allocation6], 128, 128, 8
    $region17: #{_prenorm_single.1} parent=1 // pred_fallthru
      _
    // Predicated region
    $region18: #{_prenorm_single.1} parent=1 // pred_check
      _
    $region19: #{_prenorm_single.1} parent=1 // pred_check_branch
      %42 = sbr.rel (0) target = $region21
    $region20: #{_prenorm_single.1} parent=1 // pred_region
      _
    $region21: #{_prenorm_single.1} parent=1 // pred_fallthru
      _
    // Predicated region
    $region22: #{_prenorm_single.1} parent=1 // pred_check
      _
    $region23: #{_prenorm_single.1} parent=1 // pred_check_branch
      %44 = sbr.rel (0) target = $region25
    $region24: #{_prenorm_single.1} parent=1 // pred_region
      %45 = dma.done [#allocation3], 256
    $region25: #{_prenorm_single.1} parent=1 // pred_fallthru
      _
    // Predicated region
    $region26: #{_prenorm_single.1} parent=1 // pred_check
      _
    $region27: #{_prenorm_single.1} parent=1 // pred_check_branch
      %47 = sbr.rel (0) target = $region29
    $region28: #{_prenorm_single.1} parent=1 // pred_region
      %48 = dma.done [#allocation6], 512
    $region29: #{_prenorm_single.1} parent=1 // pred_fallthru
      _
    %v49 = vld [vmem:[#allocation2] sm:$0xff]
    %v50 = vld [vmem:[#allocation2 + $0x8] sm:$0xff]
    %vm51 = vcmask 261120
    %v52 = vsel %vm51, %v49, 0.0
    %53 = vadd.xlane.f32.xlu0 %v52
    %v54 = vpop.xlane.xlu0 %53
    %v55 = vsel %vm51, %v50, 0.0
    %56 = vadd.xlane.f32.xlu0 %v55
    %v57 = vpop.xlane.xlu0 %56
    %v58 = vmul.f32 %v54, 0.03125
    %v59 = vmul.f32 %v57, 0.03125
    %v60 = vmul.f32 %v49, %v49
    %v61 = vmul.f32 %v50, %v50
    %v62 = vsel %vm51, %v60, 0.0
    %63 = vadd.xlane.f32.xlu0 %v62
    %v64 = vpop.xlane.xlu0 %63
    %v65 = vsel %vm51, %v61, 0.0
    %66 = vadd.xlane.f32.xlu0 %v65
    %v67 = vpop.xlane.xlu0 %66
    %v68 = vmul.f32 %v64, 0.03125
    %v69 = vmul.f32 %v67, 0.03125
    %v70 = vmul.f32 %v58, %v58
    %v71 = vmul.f32 %v59, %v59
    %v72 = vsub.f32 %v68, %v70
    %v73 = vsub.f32 %v69, %v71
    %v74 = vmax.f32 %v72, 0.0
    %v75 = vmax.f32 %v73, 0.0
    %v76 = vsub.f32 %v49, %v58
    %v77 = vsub.f32 %v50, %v59
    %v78 = vadd.f32 %v74, 1e-05
    %v79 = vadd.f32 %v75, 1e-05
    %v80 = vrsqrt.pop %v78
    %v81 = vrsqrt.pop %v79
    %v82 = vmul.f32 %v76, %v80
    %v83 = vmul.f32 %v77, %v81
    %v84 = vld [vmem:[%s1] sm:$0x1]
    %v86 = vlaneseq
    %v87 = vshrl.u32 %v86, 7
    %v88 = vsub.s32 0, %v87
    %v89 = vrot.slane %v84, %v88
    %v91 = vmul.f32 %v82, %v89
    %v92 = vmul.f32 %v83, %v89
    %v93 = vld [vmem:[%s2] sm:$0x1]
    %v95 = vlaneseq
    %v96 = vshrl.u32 %v95, 7
    %v97 = vsub.s32 0, %v96
    %v98 = vrot.slane %v93, %v97
    %v100 = vadd.f32 %v91, %v98
    %v101 = vadd.f32 %v92, %v98
    %v102 = vld [vmem:[#allocation5] sm:$0xff]
    %v103 = vld [vmem:[#allocation5 + $0x8] sm:$0xff]
    %v104 = vld [vmem:[#allocation5 + $0x10] sm:$0xff]
    %v105 = vld [vmem:[#allocation5 + $0x18] sm:$0xff]
    %v106 = vld [vmem:[%s4] sm:$0x1]
    %v108 = vlaneseq
    %v109 = vshrl.u32 %v108, 7
    %v110 = vsub.s32 0, %v109
    %v111 = vrot.slane %v106, %v110
    %v114 = vsel %vm51, %v100, 0
    %v117 = vsel %vm51, %v101, 0
    %119 = vmatprep.subr.mxu0 0.0
    %120 = vmatpush1.msra.mxu0 %v102
    %121 = vmatprep.subr.mxu0 0.0
    %122 = vmatpush1.msra.mxu0 %v103
    %123 = vmatprep.subr.mxu0 0.0
    %124 = vmatpush1.msra.mxu0 %v104
    %125 = vmatprep.subr.mxu0 0.0
    %126 = vmatpush1.msra.mxu0 %v105
    %127 = vmatprep.subr.mxu0 0.0
    %128 = vmatpush1.msra.mxu0 0.0
    %129 = vmatprep.subr.mxu0 0.0
    %130 = vmatpush1.msra.mxu0 0.0
    %131 = vmatprep.subr.mxu0 0.0
    %132 = vmatpush1.msra.mxu0 0.0
    %133 = vmatprep.subr.mxu0 0.0
    %134 = vmatpush1.msra.mxu0 0.0
    %135 = vmatprep.subr.mxu0 0.0
    %136 = vmatpush1.msra.mxu0 0.0
    %137 = vmatprep.subr.mxu0 0.0
    %138 = vmatpush1.msra.mxu0 0.0
    %139 = vmatprep.subr.mxu0 0.0
    %140 = vmatpush1.msra.mxu0 0.0
    %141 = vmatprep.subr.mxu0 0.0
    %142 = vmatpush1.msra.mxu0 0.0
    %143 = vmatprep.subr.mxu0 0.0
    %144 = vmatpush1.msra.mxu0 0.0
    %145 = vmatprep.subr.mxu0 0.0
    %146 = vmatpush1.msra.mxu0 0.0
    %147 = vmatprep.subr.mxu0 0.0
    %148 = vmatpush1.msra.mxu0 0.0
    %149 = vmatprep.subr.mxu0 0.0
    %150 = vmatpush1.msra.mxu0 0.0
    %151 = vmatprep.subr.mxu0 0.0
    %152 = vmatpush1.msra.mxu0 0.0
    %153 = vmatprep.subr.mxu0 0.0
    %154 = vmatpush1.msra.mxu0 0.0
    %155 = vmatprep.subr.mxu0 0.0
    %156 = vmatpush1.msra.mxu0 0.0
    %157 = vmatprep.subr.mxu0 0.0
    %158 = vmatpush1.msra.mxu0 0.0
    %159 = vmatprep.subr.mxu0 0.0
    %160 = vmatpush1.msra.mxu0 0.0
    %161 = vmatprep.subr.mxu0 0.0
    %162 = vmatpush1.msra.mxu0 0.0
    %163 = vmatprep.subr.mxu0 0.0
    %164 = vmatpush1.msra.mxu0 0.0
    %165 = vmatprep.subr.mxu0 0.0
    %166 = vmatpush1.msra.mxu0 0.0
    %167 = vmatprep.subr.mxu0 0.0
    %168 = vmatpush1.msra.mxu0 0.0
    %169 = vmatprep.subr.mxu0 0.0
    %170 = vmatpush1.msra.mxu0 0.0
    %171 = vmatprep.subr.mxu0 0.0
    %172 = vmatpush1.msra.mxu0 0.0
    %173 = vmatprep.subr.mxu0 0.0
    %174 = vmatpush1.msra.mxu0 0.0
    %175 = vmatprep.subr.mxu0 0.0
    %176 = vmatpush1.msra.mxu0 0.0
    %177 = vmatprep.subr.mxu0 0.0
    %178 = vmatpush1.msra.mxu0 0.0
    %179 = vmatprep.subr.mxu0 0.0
    %180 = vmatpush1.msra.mxu0 0.0
    %181 = vmatprep.subr.mxu0 0.0
    %182 = vmatpush1.msra.mxu0 0.0
    %183 = vmatprep.mubr.f32.mxu0 0.0
    %184 = vmatmul.mubr.f32.gmra.mrb[0].mxu0 %v114
    %v185 = vpop.f32.mrb[0].mxu0
    %v186 = vadd.f32 %v111, %v185
    %v187 = vpop.f32.mrb[0].mxu0
    %188 = vmatprep.mubr.f32.mxu0 0.0
    %189 = vmatmul.mubr.f32.gmra.mrb[0].mxu0 %v117
    %v190 = vpop.f32.mrb[0].mxu0
    %v191 = vadd.f32 %v111, %v190
    %v192 = vpop.f32.mrb[0].mxu0
    %193 = vdwg.mxu0
    %194 = vst.msk [vmem:[#allocation7] sm:$0xff] %vm51, %v186
    %195 = vst.msk [vmem:[#allocation7 + $0x8] sm:$0xff] %vm51, %v191
    // Predicated region
    $region30: #{_prenorm_single.1} parent=1 // pred_check
      _
    $region31: #{_prenorm_single.1} parent=1 // pred_check_branch
      %197 = sbr.rel (0) target = $region33
    $region32: #{_prenorm_single.1} parent=1 // pred_region
      %s199 = ssub.s32 256, 256
      %200 = vsyncadd [#allocation4], %s199
      %s201 = sshll.u32 [#allocation7], 4
      %s202 = int_to_ptr.vmem [resolvable:$true] %s201
      %207 = dma.vmem_to_hbm [thread:$0]  %s202, 256, %s5, [#allocation4], 128, 128, 8
    $region33: #{_prenorm_single.1} parent=1 // pred_fallthru
      _
    // Predicated region
    $region34: #{_prenorm_single.1} parent=1 // pred_check
      _
    $region35: #{_prenorm_single.1} parent=1 // pred_check_branch
      %209 = sbr.rel (0) target = $region37
    $region36: #{_prenorm_single.1} parent=1 // pred_region
      %210 = dma.done [#allocation4], 256
    $region37: #{_prenorm_single.1} parent=1 // pred_fallthru
      _
    %211 = vsyncpa [#allocation3], 1
    %212 = vsyncpa [#allocation6], 1
    %213 = vsyncpa [#allocation4], 1

</llo_original>
